<compile_context>
chip_gen: v5e
topology: v5e:2x2
jax: 0.10.0
libtpu: 0.0.40
codegen_flags: <defaults>
</compile_context>

<pallas_src>
import numpy as np
import jax
import jax.numpy as jnp
from jax import lax
from jax.experimental import pallas as pl
from jax.experimental.pallas import tpu as pltpu

NBATCH  = 2
NATOMS  = 8
NTYPES  = 2
NRBF    = 8
CLUSTER = 2                       # cluster_number
HIDDEN  = 32
RC      = 4.0
TM      = 128                     # atom tile (lane dimension); multiple of 128
FEAT    = NRBF + NRBF * NRBF      # 72 = descriptor width after cluster expansion


# -----------------------------------------------------------------------------
# Fused Pallas kernel: cluster expansion + MLP forward + input-VJP in one pass.
# Everything is kept in the atoms-on-lanes (transposed) layout.
# -----------------------------------------------------------------------------
def _fused_energy_grad_kernel(d_ref, sb_ref, w1t_ref, w1_ref, b1_ref,
                              w2t_ref, w2_ref, b2_ref, w3c_ref,
                              e_ref, dd_ref):
    """Per 128-atom tile (atoms on lanes):
         d_ref   : (NRBF, TM)  squared radial density, transposed, lane-dense
         sb_ref  : (1, TM)     per-atom species bias (b3 folded in)
         w1t/w1  : (H, F) / (F, H)   both orientations of layer-1 weights
         w2t/w2  : (H, H) / (H, H)
         b1/b2   : (H, 1)      bias columns (broadcast across lanes)
         w3c     : (H, 1)      readout column
         e_ref   : (1, TM)     per-atom energy, lane-dense output
         dd_ref  : (NRBF, TM)  d(energy_t)/d(density_t,:), lane-dense output
    """
    d_t = d_ref[...]                                            # (8, TM)

    # cluster expansion (cluster_number=2): feat rows = [d, vec(d ⊗ d)]
    # row NRBF + j*NRBF + k  ==  d_j * d_k  (matches 'ij,ik->ijk'.reshape)
    quad_rows = [d_t * d_t[j:j + 1, :] for j in range(NRBF)]    # each (8, TM)
    feat_t = jnp.concatenate([d_t] + quad_rows, axis=0)         # (72, TM)

    # ---- forward: h = tanh(Wᵀ·x + b) in the transposed layout ---------------
    h1_t = jnp.tanh(jnp.dot(w1t_ref[...], feat_t,
                            preferred_element_type=jnp.float32)
                    + b1_ref[...])                              # (H, TM)
    h2_t = jnp.tanh(jnp.dot(w2t_ref[...], h1_t,
                            preferred_element_type=jnp.float32)
                    + b2_ref[...])                              # (H, TM)

    w3c = w3c_ref[...]                                          # (H, 1)
    # readout: e_t = Σ_h w3_h * h2[h, t]  (sublane reduction -> lane-dense row)
    e_row = jnp.sum(w3c * h2_t, axis=0, keepdims=True)          # (1, TM)
    e_ref[...] = e_row + sb_ref[...]

    # ---- backward with unit cotangent (varene = Σ per-atom energies) --------
    d_pre2 = w3c * (1.0 - h2_t * h2_t)                          # (H, TM)
    d_h1 = jnp.dot(w2_ref[...], d_pre2,
                   preferred_element_type=jnp.float32)          # W2 @ .  (H, TM)
    d_pre1 = d_h1 * (1.0 - h1_t * h1_t)                         # (H, TM)
    d_feat = jnp.dot(w1_ref[...], d_pre1,
                     preferred_element_type=jnp.float32)        # W1 @ .  (72, TM)

    # VJP of the cluster expansion: feat_row(8+8j+k) = d_j * d_k
    acc = d_feat[0:NRBF, :]                                     # linear part (8, TM)
    rows_b = []
    for j in range(NRBF):
        gj = d_feat[NRBF + j * NRBF: NRBF + (j + 1) * NRBF, :]  # (8, TM), vreg-aligned
        acc = acc + gj * d_t[j:j + 1, :]                        # δ_{mk} d_j term
        rows_b.append(jnp.sum(gj * d_t, axis=0, keepdims=True)) # δ_{mj} d_k term
    dd_ref[...] = acc + jnp.concatenate(rows_b, axis=0)         # (8, TM)


def make_atom_energy(W1, b1, W2, b2, w3row, tm=TM):
    """Returns atom_energy(density, sbias) -> per-atom energies (NTA,), with a
    custom VJP whose residual (d energy / d density) is produced by the SAME
    fused Pallas launch as the forward pass."""
    F, H = W1.shape
    assert F == FEAT and CLUSTER == 2
    # TODO(synk): in-kernel cluster expansion + VJP implemented for
    # cluster_number == 2; higher orders would extend the expansion recursion.

    # Both weight orientations as tiny constant operands (no in-kernel transposes).
    W1T = W1.T                                # (H, F)
    W2T = W2.T                                # (H, H)
    b1c = b1.reshape(H, 1)
    b2c = b2.reshape(H, 1)
    w3c = w3row.reshape(H, 1)

    def _fused_call(density, sbias):
        nta = density.shape[0]
        ntiles = pl.cdiv(nta, tm)
        nrows = ntiles * tm
        # atoms -> lane axis; only the per-atom tensors are padded (ragged tile)
        dpad_t = jnp.pad(density, ((0, nrows - nta), (0, 0))).T      # (NRBF, nrows)
        sbpad = jnp.pad(sbias, (0, nrows - nta)).reshape(1, nrows)   # (1, nrows)

        full = lambda shape: pl.BlockSpec(shape, lambda i: (0, 0))
        e, dd_t = pl.pallas_call(
            _fused_energy_grad_kernel,
            out_shape=(jax.ShapeDtypeStruct((1, nrows), jnp.float32),
                       jax.ShapeDtypeStruct((NRBF, nrows), jnp.float32)),
            grid=(ntiles,),
            in_specs=[pl.BlockSpec((NRBF, tm), lambda i: (0, i)),    # density (T)
                      pl.BlockSpec((1, tm), lambda i: (0, i)),       # sbias row
                      full((H, F)), full((F, H)), full((H, 1)),      # W1T, W1, b1
                      full((H, H)), full((H, H)), full((H, 1)),      # W2T, W2, b2
                      full((H, 1))],                                 # w3 column
            out_specs=(pl.BlockSpec((1, tm), lambda i: (0, i)),      # energies
                       pl.BlockSpec((NRBF, tm), lambda i: (0, i))),  # d_density (T)
            compiler_params=pltpu.CompilerParams(
                dimension_semantics=("parallel",)),
        )(dpad_t, sbpad, W1T, W1, b1c, W2T, W2, b2c, w3c)
        # transpose back to (NTA, NRBF) in plain JAX (layout plumbing only)
        return e.reshape(-1)[:nta], dd_t[:, :nta].T

    @jax.custom_vjp
    def atom_energy(density, sbias):
        e, _ = _fused_call(density, sbias)
        return e

    def fwd(density, sbias):
        e, dd = _fused_call(density, sbias)        # one launch: energy + grad
        return e, dd

    def bwd(dd, g):
        # energy_t depends only on density row t => VJP is a row-wise scale.
        return g[:, None] * dd, g

    atom_energy.defvjp(fwd, bwd)
    return atom_energy


# -----------------------------------------------------------------------------
# Synthetic `self.density`: embedded Gaussian radial density (plain-JAX glue).
# -----------------------------------------------------------------------------
def compute_density(cart, species_flat, atom_index, shifts, emb, centers, alpha):
    # TODO(synk): data-dependent neighbor gather / scatter-add stays in JAX.
    nta = cart.shape[0] * cart.shape[1]
    cart_flat = cart.reshape(nta, 3)
    i_idx, j_idx = atom_index[0], atom_index[1]
    rij = cart_flat[j_idx] + shifts - cart_flat[i_idx]             # (npairs, 3)
    d = jnp.sqrt(jnp.sum(rij * rij, axis=-1) + 1e-12)              # (npairs,)
    fcut = 0.5 * (jnp.cos(jnp.pi * jnp.minimum(d / RC, 1.0)) + 1.0)
    rbf = jnp.exp(-alpha * (d[:, None] - centers[None, :]) ** 2) * fcut[:, None]
    cj = emb[species_flat[j_idx]]                                  # (npairs,)
    contrib = cj[:, None] * rbf                                    # (npairs, NRBF)
    dens = jnp.zeros((nta, NRBF), jnp.float32).at[i_idx].add(contrib)
    return dens * dens                                             # (NTA, NRBF)


# -----------------------------------------------------------------------------
# Property.forward equivalent.
# -----------------------------------------------------------------------------
def property_forward(cart, numatoms, species, atom_index, shifts, energy_fn,
                     emb, centers, alpha, sbias_table, b3):
    nbatch = numatoms.shape[0]
    species_flat = species.reshape(-1)
    density = compute_density(cart, species_flat, atom_index, shifts,
                              emb, centers, alpha)                 # (NTA, NRBF)
    sbias = sbias_table[species_flat] + b3                         # fold b3
    energies = energy_fn(density, sbias)                           # (NTA,)
    varene = jnp.sum(energies.reshape(nbatch, -1), axis=1)         # (nbatch,)
    return varene


def property_apply(cart, numatoms, species, atom_index, shifts, energy_fn,
                   emb, centers, alpha, sbias_table, b3):
    def scalar_fn(c):
        varene = property_forward(c, numatoms, species, atom_index, shifts,
                                  energy_fn, emb, centers, alpha,
                                  sbias_table, b3)
        return jnp.sum(varene), varene            # grad_outputs = ones
    (_, varene), g = jax.value_and_grad(scalar_fn, has_aux=True)(cart)
    force = -g.reshape(numatoms.shape[0], -1)     # (nbatch, natoms*3)
    return varene, force


# -----------------------------------------------------------------------------
# Pure-JAX reference (same weights, HIGHEST precision, full autodiff chain).
# -----------------------------------------------------------------------------
def make_atom_energy_ref(W1, b1, W2, b2, w3row):
    def atom_energy_ref(density, sbias):
        nta = density.shape[0]
        desc = [density]
        for _ in range(1, CLUSTER):
            desc.append(jnp.einsum('ij,ik->ijk', desc[-1], density)
                        .reshape(nta, -1))
        feat = jnp.concatenate(desc, axis=1)
        hp = lax.Precision.HIGHEST
        h1 = jnp.tanh(jnp.dot(feat, W1, precision=hp) + b1)
        h2 = jnp.tanh(jnp.dot(h1, W2, precision=hp) + b2)
        return jnp.sum(h2 * w3row, axis=-1) + sbias
    return atom_energy_ref


if __name__ == "__main__":
    key = jax.random.PRNGKey(0)
    ks = jax.random.split(key, 8)

    cart = jax.random.uniform(ks[0], (NBATCH, NATOMS, 3), dtype=jnp.float32,
                              minval=0.0, maxval=3.0)
    numatoms = jnp.full((NBATCH,), NATOMS, dtype=jnp.int32)
    species = jnp.asarray(np.tile(np.arange(NATOMS) % NTYPES, (NBATCH, 1)),
                          dtype=jnp.int32)

    # fully connected intra-config neighbor list (no PBC -> zero shifts)
    pairs = [(b * NATOMS + i, b * NATOMS + j)
             for b in range(NBATCH) for i in range(NATOMS)
             for j in range(NATOMS) if i != j]
    atom_index = jnp.asarray(np.array(pairs, dtype=np.int32).T)    # (2, npairs)
    shifts = jnp.zeros((atom_index.shape[1], 3), dtype=jnp.float32)

    # deterministic synthetic parameters
    emb = 0.3 + 0.4 * jax.random.uniform(ks[1], (NTYPES,), dtype=jnp.float32)
    centers = jnp.linspace(0.5, RC, NRBF, dtype=jnp.float32)
    alpha = jnp.float32(1.0)
    W1 = jax.random.normal(ks[2], (FEAT, HIDDEN), dtype=jnp.float32) / np.sqrt(FEAT)
    b1 = 0.1 * jax.random.normal(ks[3], (1, HIDDEN), dtype=jnp.float32)
    W2 = jax.random.normal(ks[4], (HIDDEN, HIDDEN), dtype=jnp.float32) / np.sqrt(HIDDEN)
    b2 = 0.1 * jax.random.normal(ks[5], (1, HIDDEN), dtype=jnp.float32)
    w3row = jax.random.normal(ks[6], (1, HIDDEN), dtype=jnp.float32) / np.sqrt(HIDDEN)
    b3 = jnp.float32(0.0)                       # folded into the species bias
    sbias_table = 0.1 * jax.random.normal(ks[7], (NTYPES,), dtype=jnp.float32)

    energy_pallas = make_atom_energy(W1, b1, W2, b2, w3row)
    run = jax.jit(lambda c: property_apply(c, numatoms, species, atom_index,
                                           shifts, energy_pallas, emb, centers,
                                           alpha, sbias_table, b3))
    varene, force = run(cart)
    jax.block_until_ready((varene, force))

    energy_ref = make_atom_energy_ref(W1, b1, W2, b2, w3row)
    varene_ref, force_ref = jax.jit(
        lambda c: property_apply(c, numatoms, species, atom_index, shifts,
                                 energy_ref, emb, centers, alpha,
                                 sbias_table, b3))(cart)
    jax.block_until_ready((varene_ref, force_ref))

    assert varene.shape == (NBATCH,) and force.shape == (NBATCH, NATOMS * 3)
    assert np.all(np.isfinite(np.asarray(varene)))
    assert np.all(np.isfinite(np.asarray(force)))
    np.testing.assert_allclose(np.asarray(varene), np.asarray(varene_ref),
                               rtol=5e-2, atol=5e-2)
    np.testing.assert_allclose(np.asarray(force), np.asarray(force_ref),
                               rtol=5e-2, atol=5e-2)
    print("KERNEL_OK")
</pallas_src>

<mosaic_0001>
module attributes {stable_mosaic.version = 11 : i64} {
  func.func @_fused_energy_grad_kernel(%arg0: i32, %arg1: memref<8x128xf32, #tpu.memory_space<vmem>>, %arg2: memref<1x128xf32, #tpu.memory_space<vmem>>, %arg3: memref<32x72xf32, #tpu.memory_space<vmem>>, %arg4: memref<72x32xf32, #tpu.memory_space<vmem>>, %arg5: memref<32x1xf32, #tpu.memory_space<vmem>>, %arg6: memref<32x32xf32, #tpu.memory_space<vmem>>, %arg7: memref<32x32xf32, #tpu.memory_space<vmem>>, %arg8: memref<32x1xf32, #tpu.memory_space<vmem>>, %arg9: memref<32x1xf32, #tpu.memory_space<vmem>>, %arg10: memref<1x128xf32, #tpu.memory_space<vmem>>, %arg11: memref<8x128xf32, #tpu.memory_space<vmem>>) attributes {dimension_semantics = [#tpu.dimension_semantics<parallel>], iteration_bounds = array<i64: 1>, scalar_prefetch = 0 : i64, scratch_operands = 0 : i64, tpu.core_type = #tpu.core_type<tc>, window_params = [{transform_indices = @transform_0, window_bounds = array<i64: 8, 128>}, {transform_indices = @transform_1, window_bounds = array<i64: 1, 128>}, {pipeline_mode = #tpu.pipeline_mode<synchronous>, transform_indices = @transform_2, window_bounds = array<i64: 32, 72>}, {pipeline_mode = #tpu.pipeline_mode<synchronous>, transform_indices = @transform_3, window_bounds = array<i64: 72, 32>}, {pipeline_mode = #tpu.pipeline_mode<synchronous>, transform_indices = @transform_4, window_bounds = array<i64: 32, 1>}, {pipeline_mode = #tpu.pipeline_mode<synchronous>, transform_indices = @transform_5, window_bounds = array<i64: 32, 32>}, {pipeline_mode = #tpu.pipeline_mode<synchronous>, transform_indices = @transform_6, window_bounds = array<i64: 32, 32>}, {pipeline_mode = #tpu.pipeline_mode<synchronous>, transform_indices = @transform_7, window_bounds = array<i64: 32, 1>}, {pipeline_mode = #tpu.pipeline_mode<synchronous>, transform_indices = @transform_8, window_bounds = array<i64: 32, 1>}, {transform_indices = @transform_9, window_bounds = array<i64: 1, 128>}, {transform_indices = @transform_10, window_bounds = array<i64: 8, 128>}]} {
    %c0 = arith.constant 0 : index
    %c0_0 = arith.constant 0 : index
    %0 = vector.load %arg1[%c0, %c0_0] : memref<8x128xf32, #tpu.memory_space<vmem>>, vector<8x128xf32>
    %1 = vector.extract_strided_slice %0 {offsets = [0, 0], sizes = [1, 128], strides = [1, 1]} : vector<8x128xf32> to vector<1x128xf32>
    %2 = vector.broadcast %1 : vector<1x128xf32> to vector<8x128xf32>
    %3 = arith.mulf %0, %2 : vector<8x128xf32>
    %4 = vector.extract_strided_slice %0 {offsets = [1, 0], sizes = [1, 128], strides = [1, 1]} : vector<8x128xf32> to vector<1x128xf32>
    %5 = vector.broadcast %4 : vector<1x128xf32> to vector<8x128xf32>
    %6 = arith.mulf %0, %5 : vector<8x128xf32>
    %7 = vector.extract_strided_slice %0 {offsets = [2, 0], sizes = [1, 128], strides = [1, 1]} : vector<8x128xf32> to vector<1x128xf32>
    %8 = vector.broadcast %7 : vector<1x128xf32> to vector<8x128xf32>
    %9 = arith.mulf %0, %8 : vector<8x128xf32>
    %10 = vector.extract_strided_slice %0 {offsets = [3, 0], sizes = [1, 128], strides = [1, 1]} : vector<8x128xf32> to vector<1x128xf32>
    %11 = vector.broadcast %10 : vector<1x128xf32> to vector<8x128xf32>
    %12 = arith.mulf %0, %11 : vector<8x128xf32>
    %13 = vector.extract_strided_slice %0 {offsets = [4, 0], sizes = [1, 128], strides = [1, 1]} : vector<8x128xf32> to vector<1x128xf32>
    %14 = vector.broadcast %13 : vector<1x128xf32> to vector<8x128xf32>
    %15 = arith.mulf %0, %14 : vector<8x128xf32>
    %16 = vector.extract_strided_slice %0 {offsets = [5, 0], sizes = [1, 128], strides = [1, 1]} : vector<8x128xf32> to vector<1x128xf32>
    %17 = vector.broadcast %16 : vector<1x128xf32> to vector<8x128xf32>
    %18 = arith.mulf %0, %17 : vector<8x128xf32>
    %19 = vector.extract_strided_slice %0 {offsets = [6, 0], sizes = [1, 128], strides = [1, 1]} : vector<8x128xf32> to vector<1x128xf32>
    %20 = vector.broadcast %19 : vector<1x128xf32> to vector<8x128xf32>
    %21 = arith.mulf %0, %20 : vector<8x128xf32>
    %22 = vector.extract_strided_slice %0 {offsets = [7, 0], sizes = [1, 128], strides = [1, 1]} : vector<8x128xf32> to vector<1x128xf32>
    %23 = vector.broadcast %22 : vector<1x128xf32> to vector<8x128xf32>
    %24 = arith.mulf %0, %23 : vector<8x128xf32>
    %25 = tpu.concatenate %0, %3, %6, %9, %12, %15, %18, %21, %24 in 0 : vector<8x128xf32>, vector<8x128xf32>, vector<8x128xf32>, vector<8x128xf32>, vector<8x128xf32>, vector<8x128xf32>, vector<8x128xf32>, vector<8x128xf32>, vector<8x128xf32> -> vector<72x128xf32>
    %c0_1 = arith.constant 0 : index
    %c0_2 = arith.constant 0 : index
    %26 = vector.load %arg3[%c0_1, %c0_2] : memref<32x72xf32, #tpu.memory_space<vmem>>, vector<32x72xf32>
    %cst = arith.constant dense<0.000000e+00> : vector<32x128xf32>
    %27 = tpu.matmul %26, %25, %cst {dimension_numbers = #tpu.dot_dimension_numbers<[1], [0], [0], [1], [0, 0, 1, 1], [], []>} : vector<32x72xf32>, vector<72x128xf32>, vector<32x128xf32> -> vector<32x128xf32>
    %c0_3 = arith.constant 0 : index
    %c0_4 = arith.constant 0 : index
    %28 = vector.load %arg5[%c0_3, %c0_4] : memref<32x1xf32, #tpu.memory_space<vmem>>, vector<32x1xf32>
    %29 = vector.broadcast %28 : vector<32x1xf32> to vector<32x128xf32>
    %30 = arith.addf %27, %29 : vector<32x128xf32>
    %31 = math.tanh %30 : vector<32x128xf32>
    %c0_5 = arith.constant 0 : index
    %c0_6 = arith.constant 0 : index
    %32 = vector.load %arg6[%c0_5, %c0_6] : memref<32x32xf32, #tpu.memory_space<vmem>>, vector<32x32xf32>
    %cst_7 = arith.constant dense<0.000000e+00> : vector<32x128xf32>
    %33 = tpu.matmul %32, %31, %cst_7 {dimension_numbers = #tpu.dot_dimension_numbers<[1], [0], [0], [1], [0, 0, 1, 1], [], []>} : vector<32x32xf32>, vector<32x128xf32>, vector<32x128xf32> -> vector<32x128xf32>
    %c0_8 = arith.constant 0 : index
    %c0_9 = arith.constant 0 : index
    %34 = vector.load %arg8[%c0_8, %c0_9] : memref<32x1xf32, #tpu.memory_space<vmem>>, vector<32x1xf32>
    %35 = vector.broadcast %34 : vector<32x1xf32> to vector<32x128xf32>
    %36 = arith.addf %33, %35 : vector<32x128xf32>
    %37 = math.tanh %36 : vector<32x128xf32>
    %c0_10 = arith.constant 0 : index
    %c0_11 = arith.constant 0 : index
    %38 = vector.load %arg9[%c0_10, %c0_11] : memref<32x1xf32, #tpu.memory_space<vmem>>, vector<32x1xf32>
    %39 = vector.broadcast %38 : vector<32x1xf32> to vector<32x128xf32>
    %40 = arith.mulf %39, %37 : vector<32x128xf32>
    %cst_12 = arith.constant dense<0.000000e+00> : vector<128xf32>
    %41 = vector.multi_reduction <add>, %40, %cst_12 [0] : vector<32x128xf32> to vector<128xf32>
    %42 = vector.shape_cast %41 : vector<128xf32> to vector<1x128xf32>
    %c0_13 = arith.constant 0 : index
    %c0_14 = arith.constant 0 : index
    %43 = vector.load %arg2[%c0_13, %c0_14] : memref<1x128xf32, #tpu.memory_space<vmem>>, vector<1x128xf32>
    %44 = arith.addf %42, %43 : vector<1x128xf32>
    %c0_15 = arith.constant 0 : index
    %c0_16 = arith.constant 0 : index
    %45 = vector.load %arg10[%c0_15, %c0_16] : memref<1x128xf32, #tpu.memory_space<vmem>>, vector<1x128xf32>
    tpu.vector_store %arg10[%c0_15, %c0_16], %44 {strides = array<i32>} : memref<1x128xf32, #tpu.memory_space<vmem>>, vector<1x128xf32>,
    %46 = arith.mulf %37, %37 : vector<32x128xf32>
    %cst_17 = arith.constant 1.000000e+00 : f32
    %47 = vector.broadcast %cst_17 : f32 to vector<32x128xf32>
    %48 = arith.subf %47, %46 : vector<32x128xf32>
    %49 = vector.broadcast %38 : vector<32x1xf32> to vector<32x128xf32>
    %50 = arith.mulf %49, %48 : vector<32x128xf32>
    %c0_18 = arith.constant 0 : index
    %c0_19 = arith.constant 0 : index
    %51 = vector.load %arg7[%c0_18, %c0_19] : memref<32x32xf32, #tpu.memory_space<vmem>>, vector<32x32xf32>
    %cst_20 = arith.constant dense<0.000000e+00> : vector<32x128xf32>
    %52 = tpu.matmul %51, %50, %cst_20 {dimension_numbers = #tpu.dot_dimension_numbers<[1], [0], [0], [1], [0, 0, 1, 1], [], []>} : vector<32x32xf32>, vector<32x128xf32>, vector<32x128xf32> -> vector<32x128xf32>
    %53 = arith.mulf %31, %31 : vector<32x128xf32>
    %cst_21 = arith.constant 1.000000e+00 : f32
    %54 = vector.broadcast %cst_21 : f32 to vector<32x128xf32>
    %55 = arith.subf %54, %53 : vector<32x128xf32>
    %56 = arith.mulf %52, %55 : vector<32x128xf32>
    %c0_22 = arith.constant 0 : index
    %c0_23 = arith.constant 0 : index
    %57 = vector.load %arg4[%c0_22, %c0_23] : memref<72x32xf32, #tpu.memory_space<vmem>>, vector<72x32xf32>
    %cst_24 = arith.constant dense<0.000000e+00> : vector<72x128xf32>
    %58 = tpu.matmul %57, %56, %cst_24 {dimension_numbers = #tpu.dot_dimension_numbers<[1], [0], [0], [1], [0, 0, 1, 1], [], []>} : vector<72x32xf32>, vector<32x128xf32>, vector<72x128xf32> -> vector<72x128xf32>
    %59 = vector.extract_strided_slice %58 {offsets = [0, 0], sizes = [8, 128], strides = [1, 1]} : vector<72x128xf32> to vector<8x128xf32>
    %60 = vector.extract_strided_slice %58 {offsets = [8, 0], sizes = [8, 128], strides = [1, 1]} : vector<72x128xf32> to vector<8x128xf32>
    %61 = vector.extract_strided_slice %0 {offsets = [0, 0], sizes = [1, 128], strides = [1, 1]} : vector<8x128xf32> to vector<1x128xf32>
    %62 = vector.broadcast %61 : vector<1x128xf32> to vector<8x128xf32>
    %63 = arith.mulf %60, %62 : vector<8x128xf32>
    %64 = arith.addf %59, %63 : vector<8x128xf32>
    %65 = arith.mulf %60, %0 : vector<8x128xf32>
    %cst_25 = arith.constant dense<0.000000e+00> : vector<128xf32>
    %66 = vector.multi_reduction <add>, %65, %cst_25 [0] : vector<8x128xf32> to vector<128xf32>
    %67 = vector.shape_cast %66 : vector<128xf32> to vector<1x128xf32>
    %68 = vector.extract_strided_slice %58 {offsets = [16, 0], sizes = [8, 128], strides = [1, 1]} : vector<72x128xf32> to vector<8x128xf32>
    %69 = vector.extract_strided_slice %0 {offsets = [1, 0], sizes = [1, 128], strides = [1, 1]} : vector<8x128xf32> to vector<1x128xf32>
    %70 = vector.broadcast %69 : vector<1x128xf32> to vector<8x128xf32>
    %71 = arith.mulf %68, %70 : vector<8x128xf32>
    %72 = arith.addf %64, %71 : vector<8x128xf32>
    %73 = arith.mulf %68, %0 : vector<8x128xf32>
    %cst_26 = arith.constant dense<0.000000e+00> : vector<128xf32>
    %74 = vector.multi_reduction <add>, %73, %cst_26 [0] : vector<8x128xf32> to vector<128xf32>
    %75 = vector.shape_cast %74 : vector<128xf32> to vector<1x128xf32>
    %76 = vector.extract_strided_slice %58 {offsets = [24, 0], sizes = [8, 128], strides = [1, 1]} : vector<72x128xf32> to vector<8x128xf32>
    %77 = vector.extract_strided_slice %0 {offsets = [2, 0], sizes = [1, 128], strides = [1, 1]} : vector<8x128xf32> to vector<1x128xf32>
    %78 = vector.broadcast %77 : vector<1x128xf32> to vector<8x128xf32>
    %79 = arith.mulf %76, %78 : vector<8x128xf32>
    %80 = arith.addf %72, %79 : vector<8x128xf32>
    %81 = arith.mulf %76, %0 : vector<8x128xf32>
    %cst_27 = arith.constant dense<0.000000e+00> : vector<128xf32>
    %82 = vector.multi_reduction <add>, %81, %cst_27 [0] : vector<8x128xf32> to vector<128xf32>
    %83 = vector.shape_cast %82 : vector<128xf32> to vector<1x128xf32>
    %84 = vector.extract_strided_slice %58 {offsets = [32, 0], sizes = [8, 128], strides = [1, 1]} : vector<72x128xf32> to vector<8x128xf32>
    %85 = vector.extract_strided_slice %0 {offsets = [3, 0], sizes = [1, 128], strides = [1, 1]} : vector<8x128xf32> to vector<1x128xf32>
    %86 = vector.broadcast %85 : vector<1x128xf32> to vector<8x128xf32>
    %87 = arith.mulf %84, %86 : vector<8x128xf32>
    %88 = arith.addf %80, %87 : vector<8x128xf32>
    %89 = arith.mulf %84, %0 : vector<8x128xf32>
    %cst_28 = arith.constant dense<0.000000e+00> : vector<128xf32>
    %90 = vector.multi_reduction <add>, %89, %cst_28 [0] : vector<8x128xf32> to vector<128xf32>
    %91 = vector.shape_cast %90 : vector<128xf32> to vector<1x128xf32>
    %92 = vector.extract_strided_slice %58 {offsets = [40, 0], sizes = [8, 128], strides = [1, 1]} : vector<72x128xf32> to vector<8x128xf32>
    %93 = vector.extract_strided_slice %0 {offsets = [4, 0], sizes = [1, 128], strides = [1, 1]} : vector<8x128xf32> to vector<1x128xf32>
    %94 = vector.broadcast %93 : vector<1x128xf32> to vector<8x128xf32>
    %95 = arith.mulf %92, %94 : vector<8x128xf32>
    %96 = arith.addf %88, %95 : vector<8x128xf32>
    %97 = arith.mulf %92, %0 : vector<8x128xf32>
    %cst_29 = arith.constant dense<0.000000e+00> : vector<128xf32>
    %98 = vector.multi_reduction <add>, %97, %cst_29 [0] : vector<8x128xf32> to vector<128xf32>
    %99 = vector.shape_cast %98 : vector<128xf32> to vector<1x128xf32>
    %100 = vector.extract_strided_slice %58 {offsets = [48, 0], sizes = [8, 128], strides = [1, 1]} : vector<72x128xf32> to vector<8x128xf32>
    %101 = vector.extract_strided_slice %0 {offsets = [5, 0], sizes = [1, 128], strides = [1, 1]} : vector<8x128xf32> to vector<1x128xf32>
    %102 = vector.broadcast %101 : vector<1x128xf32> to vector<8x128xf32>
    %103 = arith.mulf %100, %102 : vector<8x128xf32>
    %104 = arith.addf %96, %103 : vector<8x128xf32>
    %105 = arith.mulf %100, %0 : vector<8x128xf32>
    %cst_30 = arith.constant dense<0.000000e+00> : vector<128xf32>
    %106 = vector.multi_reduction <add>, %105, %cst_30 [0] : vector<8x128xf32> to vector<128xf32>
    %107 = vector.shape_cast %106 : vector<128xf32> to vector<1x128xf32>
    %108 = vector.extract_strided_slice %58 {offsets = [56, 0], sizes = [8, 128], strides = [1, 1]} : vector<72x128xf32> to vector<8x128xf32>
    %109 = vector.extract_strided_slice %0 {offsets = [6, 0], sizes = [1, 128], strides = [1, 1]} : vector<8x128xf32> to vector<1x128xf32>
    %110 = vector.broadcast %109 : vector<1x128xf32> to vector<8x128xf32>
    %111 = arith.mulf %108, %110 : vector<8x128xf32>
    %112 = arith.addf %104, %111 : vector<8x128xf32>
    %113 = arith.mulf %108, %0 : vector<8x128xf32>
    %cst_31 = arith.constant dense<0.000000e+00> : vector<128xf32>
    %114 = vector.multi_reduction <add>, %113, %cst_31 [0] : vector<8x128xf32> to vector<128xf32>
    %115 = vector.shape_cast %114 : vector<128xf32> to vector<1x128xf32>
    %116 = vector.extract_strided_slice %58 {offsets = [64, 0], sizes = [8, 128], strides = [1, 1]} : vector<72x128xf32> to vector<8x128xf32>
    %117 = vector.extract_strided_slice %0 {offsets = [7, 0], sizes = [1, 128], strides = [1, 1]} : vector<8x128xf32> to vector<1x128xf32>
    %118 = vector.broadcast %117 : vector<1x128xf32> to vector<8x128xf32>
    %119 = arith.mulf %116, %118 : vector<8x128xf32>
    %120 = arith.addf %112, %119 : vector<8x128xf32>
    %121 = arith.mulf %116, %0 : vector<8x128xf32>
    %cst_32 = arith.constant dense<0.000000e+00> : vector<128xf32>
    %122 = vector.multi_reduction <add>, %121, %cst_32 [0] : vector<8x128xf32> to vector<128xf32>
    %123 = vector.shape_cast %122 : vector<128xf32> to vector<1x128xf32>
    %124 = tpu.concatenate %67, %75, %83, %91, %99, %107, %115, %123 in 0 : vector<1x128xf32>, vector<1x128xf32>, vector<1x128xf32>, vector<1x128xf32>, vector<1x128xf32>, vector<1x128xf32>, vector<1x128xf32>, vector<1x128xf32> -> vector<8x128xf32>
    %125 = arith.addf %120, %124 : vector<8x128xf32>
    %c0_33 = arith.constant 0 : index
    %c0_34 = arith.constant 0 : index
    %126 = vector.load %arg11[%c0_33, %c0_34] : memref<8x128xf32, #tpu.memory_space<vmem>>, vector<8x128xf32>
    tpu.vector_store %arg11[%c0_33, %c0_34], %125 {strides = array<i32>} : memref<8x128xf32, #tpu.memory_space<vmem>>, vector<8x128xf32>,
    return
  }
  func.func @transform_0(%arg0: i32) -> (i32, i32) {
    %c0_i32 = arith.constant 0 : i32
    %c0_i32_0 = arith.constant 0 : i32
    return %c0_i32, %arg0 : i32, i32
  }
  func.func @transform_1(%arg0: i32) -> (i32, i32) {
    %c0_i32 = arith.constant 0 : i32
    %c0_i32_0 = arith.constant 0 : i32
    return %c0_i32, %arg0 : i32, i32
  }
  func.func @transform_2(%arg0: i32) -> (i32, i32) {
    %c0_i32 = arith.constant 0 : i32
    %c0_i32_0 = arith.constant 0 : i32
    %c0_i32_1 = arith.constant 0 : i32
    return %c0_i32, %c0_i32_0 : i32, i32
  }
  func.func @transform_3(%arg0: i32) -> (i32, i32) {
    %c0_i32 = arith.constant 0 : i32
    %c0_i32_0 = arith.constant 0 : i32
    %c0_i32_1 = arith.constant 0 : i32
    return %c0_i32, %c0_i32_0 : i32, i32
  }
  func.func @transform_4(%arg0: i32) -> (i32, i32) {
    %c0_i32 = arith.constant 0 : i32
    %c0_i32_0 = arith.constant 0 : i32
    %c0_i32_1 = arith.constant 0 : i32
    return %c0_i32, %c0_i32_0 : i32, i32
  }
  func.func @transform_5(%arg0: i32) -> (i32, i32) {
    %c0_i32 = arith.constant 0 : i32
    %c0_i32_0 = arith.constant 0 : i32
    %c0_i32_1 = arith.constant 0 : i32
    return %c0_i32, %c0_i32_0 : i32, i32
  }
  func.func @transform_6(%arg0: i32) -> (i32, i32) {
    %c0_i32 = arith.constant 0 : i32
    %c0_i32_0 = arith.constant 0 : i32
    %c0_i32_1 = arith.constant 0 : i32
    return %c0_i32, %c0_i32_0 : i32, i32
  }
  func.func @transform_7(%arg0: i32) -> (i32, i32) {
    %c0_i32 = arith.constant 0 : i32
    %c0_i32_0 = arith.constant 0 : i32
    %c0_i32_1 = arith.constant 0 : i32
    return %c0_i32, %c0_i32_0 : i32, i32
  }
  func.func @transform_8(%arg0: i32) -> (i32, i32) {
    %c0_i32 = arith.constant 0 : i32
    %c0_i32_0 = arith.constant 0 : i32
    %c0_i32_1 = arith.constant 0 : i32
    return %c0_i32, %c0_i32_0 : i32, i32
  }
  func.func @transform_9(%arg0: i32) -> (i32, i32) {
    %c0_i32 = arith.constant 0 : i32
    %c0_i32_0 = arith.constant 0 : i32
    return %c0_i32, %arg0 : i32, i32
  }
  func.func @transform_10(%arg0: i32) -> (i32, i32) {
    %c0_i32 = arith.constant 0 : i32
    %c0_i32_0 = arith.constant 0 : i32
    return %c0_i32, %arg0 : i32, i32
  }
}

</mosaic_0001>

<llo_original>
// kernel: mul.50
$region0: #{mul.50}
  #allocation0 [shape = 's32[1]{0}', space=sflag, size = 0x4, scoped, tag = 'scoped memory for mul.50']
  %s0 = inlined_call_operand.vmem [shape: f32[16,8], index: 0, kind: input, shape index: {}, may-alias: {0,1}]
  %s1 = inlined_call_operand.vmem [shape: f32[16,8], index: 1, kind: input, shape index: {}, may-alias: {0,1}]
  %s2 = inlined_call_operand.vmem [shape: f32[16,8], index: 2, kind: output, shape index: {}]
  %v3 = vld [vmem:[%s0] sm:$0xff]
  %v4 = vld [vmem:[%s1] sm:$0xff]
  %5 = xla_tuple %v3, %v4
  %6 = xla_tuple %5
  %v7 = vmul.f32 %v3, %v4
  %8 = xla_tuple %v7
  %9 = vst [vmem:[%s2] sm:$0xff] %v7

// kernel: jvp__.1
$region0: #{jvp__.1}
  #allocation0 [shape = 'u32[]', space=smem, size = 0x4, offset = 0x4, fixed_abs, tag = 'smem constant byte address 0x4 - core index']
  #allocation1 [shape = 'u32[72,128]{1,0:T(1,128)}', space=vmem, size = 0x9000, scoped, tag = 'internal scratch']
  %s0 = inlined_call_operand.vmem [shape: f32[8,128], index: 0, kind: input, shape index: {}]
  %s1 = inlined_call_operand.vmem [shape: f32[1,128], index: 1, kind: input, shape index: {}]
  %s2 = inlined_call_operand.vmem [shape: f32[32,72], index: 2, kind: input, shape index: {}]
  %s3 = inlined_call_operand.vmem [shape: f32[72,32], index: 3, kind: input, shape index: {}]
  %s4 = inlined_call_operand.vmem [shape: f32[32,1], index: 4, kind: input, shape index: {}]
  %s5 = inlined_call_operand.vmem [shape: f32[32,32], index: 5, kind: input, shape index: {}]
  %s6 = inlined_call_operand.vmem [shape: f32[32,32], index: 6, kind: input, shape index: {}]
  %s7 = inlined_call_operand.vmem [shape: f32[32,1], index: 7, kind: input, shape index: {}]
  %s8 = inlined_call_operand.vmem [shape: f32[32,1], index: 8, kind: input, shape index: {}]
  %s9 = inlined_call_operand.vmem [shape: f32[1,128], index: 9, kind: output, shape index: {0}]
  %s10 = inlined_call_operand.vmem [shape: f32[8,128], index: 10, kind: output, shape index: {1}]
  %11 = xla_tuple %s9, %s10
  %s12 = sld [smem:[#allocation0]]
  $region54: #{jvp__.1} parent=0
    _
  %s14 = ssub.s32 1, %s12
  %s15 = scalar_select 0, %s14, %s12
  // Predicated region
  $region2: #{jvp__.1} parent=0 // pred_check
    _
  $region3: #{jvp__.1} parent=0 // pred_check_branch
    %17 = sbr.rel (0) target = $region5
  $region4: #{jvp__.1} parent=0 // pred_region
    _
  $region5: #{jvp__.1} parent=0 // pred_fallthru
    _
  // Predicated region
  $region6: #{jvp__.1} parent=0 // pred_check
    _
  $region7: #{jvp__.1} parent=0 // pred_check_branch
    %19 = sbr.rel (0) target = $region9
  $region8: #{jvp__.1} parent=0 // pred_region
    _
  $region9: #{jvp__.1} parent=0 // pred_fallthru
    _
  // Predicated region
  $region10: #{jvp__.1} parent=0 // pred_check
    _
  $region11: #{jvp__.1} parent=0 // pred_check_branch
    %21 = sbr.rel (0) target = $region13
  $region12: #{jvp__.1} parent=0 // pred_region
    _
  $region13: #{jvp__.1} parent=0 // pred_fallthru
    _
  // Predicated region
  $region14: #{jvp__.1} parent=0 // pred_check
    _
  $region15: #{jvp__.1} parent=0 // pred_check_branch
    %23 = sbr.rel (0) target = $region17
  $region16: #{jvp__.1} parent=0 // pred_region
    _
  $region17: #{jvp__.1} parent=0 // pred_fallthru
    _
  // Predicated region
  $region18: #{jvp__.1} parent=0 // pred_check
    _
  $region19: #{jvp__.1} parent=0 // pred_check_branch
    %25 = sbr.rel (0) target = $region21
  $region20: #{jvp__.1} parent=0 // pred_region
    _
  $region21: #{jvp__.1} parent=0 // pred_fallthru
    _
  // Predicated region
  $region22: #{jvp__.1} parent=0 // pred_check
    _
  $region23: #{jvp__.1} parent=0 // pred_check_branch
    %27 = sbr.rel (0) target = $region25
  $region24: #{jvp__.1} parent=0 // pred_region
    _
  $region25: #{jvp__.1} parent=0 // pred_fallthru
    _
  // Predicated region
  $region26: #{jvp__.1} parent=0 // pred_check
    _
  $region27: #{jvp__.1} parent=0 // pred_check_branch
    %29 = sbr.rel (0) target = $region29
  $region28: #{jvp__.1} parent=0 // pred_region
    _
  $region29: #{jvp__.1} parent=0 // pred_fallthru
    _
  // Predicated region
  $region30: #{jvp__.1} parent=0 // pred_check
    _
  $region31: #{jvp__.1} parent=0 // pred_check_branch
    %31 = sbr.rel (0) target = $region33
  $region32: #{jvp__.1} parent=0 // pred_region
    _
  $region33: #{jvp__.1} parent=0 // pred_fallthru
    _
  // Predicated region
  $region34: #{jvp__.1} parent=0 // pred_check
    _
  $region35: #{jvp__.1} parent=0 // pred_check_branch
    %33 = sbr.rel (0) target = $region37
  $region36: #{jvp__.1} parent=0 // pred_region
    _
  $region37: #{jvp__.1} parent=0 // pred_fallthru
    _
  %v34 = vld [vmem:[%s0] sm:$0xff]
  %v35 = vperm.slane %v34, 0
  %v36 = vmul.f32 %v34, %v35
  %v37 = vperm.slane %v34, 1
  %v38 = vmul.f32 %v34, %v37
  %v39 = vperm.slane %v34, 2
  %v40 = vmul.f32 %v34, %v39
  %v41 = vperm.slane %v34, 3
  %v42 = vmul.f32 %v34, %v41
  %v43 = vperm.slane %v34, 4
  %v44 = vmul.f32 %v34, %v43
  %v45 = vperm.slane %v34, 5
  %v46 = vmul.f32 %v34, %v45
  %v47 = vperm.slane %v34, 6
  %v48 = vmul.f32 %v34, %v47
  %v49 = vperm.slane %v34, 7
  %v50 = vmul.f32 %v34, %v49
  %v51 = vld [vmem:[%s2] sm:$0xff]
  %v52 = vld [vmem:[%s2 + $0x8] sm:$0xff]
  %v53 = vld [vmem:[%s2 + $0x10] sm:$0xff]
  %v54 = vld [vmem:[%s2 + $0x18] sm:$0xff]
  %v55 = vld [vmem:[%s4] sm:$0xff]
  %v56 = vld [vmem:[%s4 + $0x8] sm:$0xff]
  %v57 = vld [vmem:[%s4 + $0x10] sm:$0xff]
  %v58 = vld [vmem:[%s4 + $0x18] sm:$0xff]
  %60 = vset.pattern.permute.xlu0 0
  %61 = vperm.xlu0 %60, %v55
  %v62 = vpop.permute.xlu0 %61
  %65 = vset.pattern.permute.xlu0 0
  %66 = vperm.xlu0 %65, %v56
  %v67 = vpop.permute.xlu0 %66
  %70 = vset.pattern.permute.xlu0 0
  %71 = vperm.xlu0 %70, %v57
  %v72 = vpop.permute.xlu0 %71
  %75 = vset.pattern.permute.xlu0 0
  %76 = vperm.xlu0 %75, %v58
  %v77 = vpop.permute.xlu0 %76
  %vm79 = vcmask 588800
  %v81 = vsel %vm79, %v51, 0
  %v84 = vsel %vm79, %v52, 0
  %v87 = vsel %vm79, %v53, 0
  %v90 = vsel %vm79, %v54, 0
  %92 = vmatpush.msra.mxu0 0.0
  %93 = vmatpush.msra.mxu0 0.0
  %94 = vmatpush.msra.mxu0 0.0
  %95 = vmatpush.msra.mxu0 0.0
  %96 = vmatpush.msra.mxu0 0.0
  %97 = vmatpush.msra.mxu0 0.0
  %98 = vmatpush.msra.mxu0 0.0
  %99 = vmatpush.msra.mxu0 %v50
  %100 = vmatpush.msra.mxu0 %v48
  %101 = vmatpush.msra.mxu0 %v46
  %102 = vmatpush.msra.mxu0 %v44
  %103 = vmatpush.msra.mxu0 %v42
  %104 = vmatpush.msra.mxu0 %v40
  %105 = vmatpush.msra.mxu0 %v38
  %106 = vmatpush.msra.mxu0 %v36
  %107 = vmatpush.msra.mxu0 %v34
  %108 = vmatmul.f32.gmra.mxu0 %v81
  %v109 = vpop.f32.mrf.mxu0
  %v110 = vadd.f32 %v62, %v109
  %111 = vmatmul.f32.gmra.mxu0 %v84
  %v112 = vpop.f32.mrf.mxu0
  %v113 = vadd.f32 %v67, %v112
  %114 = vmatmul.f32.gmra.mxu0 %v87
  %v115 = vpop.f32.mrf.mxu0
  %v116 = vadd.f32 %v72, %v115
  %117 = vmatmul.f32.gmra.mxu0 %v90
  %v118 = vpop.f32.mrf.mxu0
  %v119 = vadd.f32 %v77, %v118
  %120 = vdwg.mxu0
  %v121 = vtanh.pop %v110
  %v122 = vtanh.pop %v113
  %v123 = vtanh.pop %v116
  %v124 = vtanh.pop %v119
  %v125 = vld [vmem:[%s5] sm:$0xff]
  %v126 = vld [vmem:[%s5 + $0x8] sm:$0xff]
  %v127 = vld [vmem:[%s5 + $0x10] sm:$0xff]
  %v128 = vld [vmem:[%s5 + $0x18] sm:$0xff]
  %v129 = vld [vmem:[%s7] sm:$0xff]
  %v130 = vld [vmem:[%s7 + $0x8] sm:$0xff]
  %v131 = vld [vmem:[%s7 + $0x10] sm:$0xff]
  %v132 = vld [vmem:[%s7 + $0x18] sm:$0xff]
  %134 = vset.pattern.permute.xlu0 0
  %135 = vperm.xlu0 %134, %v129
  %v136 = vpop.permute.xlu0 %135
  %139 = vset.pattern.permute.xlu0 0
  %140 = vperm.xlu0 %139, %v130
  %v141 = vpop.permute.xlu0 %140
  %144 = vset.pattern.permute.xlu0 0
  %145 = vperm.xlu0 %144, %v131
  %v146 = vpop.permute.xlu0 %145
  %149 = vset.pattern.permute.xlu0 0
  %150 = vperm.xlu0 %149, %v132
  %v151 = vpop.permute.xlu0 %150
  %vm153 = vcmask 261120
  %v155 = vsel %vm153, %v125, 0
  %v158 = vsel %vm153, %v126, 0
  %v161 = vsel %vm153, %v127, 0
  %v164 = vsel %vm153, %v128, 0
  %166 = vmatpush.msra.mxu0 0.0
  %167 = vmatpush.msra.mxu0 0.0
  %168 = vmatpush.msra.mxu0 0.0
  %169 = vmatpush.msra.mxu0 0.0
  %170 = vmatpush.msra.mxu0 0.0
  %171 = vmatpush.msra.mxu0 0.0
  %172 = vmatpush.msra.mxu0 0.0
  %173 = vmatpush.msra.mxu0 0.0
  %174 = vmatpush.msra.mxu0 0.0
  %175 = vmatpush.msra.mxu0 0.0
  %176 = vmatpush.msra.mxu0 0.0
  %177 = vmatpush.msra.mxu0 0.0
  %178 = vmatpush.msra.mxu0 %v124
  %179 = vmatpush.msra.mxu0 %v123
  %180 = vmatpush.msra.mxu0 %v122
  %181 = vmatpush.msra.mxu0 %v121
  %182 = vmatmul.f32.gmra.mxu0 %v155
  %v183 = vpop.f32.mrf.mxu0
  %v184 = vadd.f32 %v136, %v183
  %185 = vmatmul.f32.gmra.mxu0 %v158
  %v186 = vpop.f32.mrf.mxu0
  %v187 = vadd.f32 %v141, %v186
  %188 = vmatmul.f32.gmra.mxu0 %v161
  %v189 = vpop.f32.mrf.mxu0
  %v190 = vadd.f32 %v146, %v189
  %191 = vmatmul.f32.gmra.mxu0 %v164
  %v192 = vpop.f32.mrf.mxu0
  %v193 = vadd.f32 %v151, %v192
  %194 = vdwg.mxu0
  %v195 = vtanh.pop %v184
  %v196 = vtanh.pop %v187
  %v197 = vtanh.pop %v190
  %v198 = vtanh.pop %v193
  %v199 = vld [vmem:[%s8] sm:$0xff]
  %v200 = vld [vmem:[%s8 + $0x8] sm:$0xff]
  %v201 = vld [vmem:[%s8 + $0x10] sm:$0xff]
  %v202 = vld [vmem:[%s8 + $0x18] sm:$0xff]
  %204 = vset.pattern.permute.xlu0 0
  %205 = vperm.xlu0 %204, %v199
  %v206 = vpop.permute.xlu0 %205
  %209 = vset.pattern.permute.xlu0 0
  %210 = vperm.xlu0 %209, %v200
  %v211 = vpop.permute.xlu0 %210
  %214 = vset.pattern.permute.xlu0 0
  %215 = vperm.xlu0 %214, %v201
  %v216 = vpop.permute.xlu0 %215
  %219 = vset.pattern.permute.xlu0 0
  %220 = vperm.xlu0 %219, %v202
  %v221 = vpop.permute.xlu0 %220
  %v223 = vmul.f32 %v206, %v195
  %v224 = vmul.f32 %v211, %v196
  %v225 = vmul.f32 %v216, %v197
  %v226 = vmul.f32 %v221, %v198
  %v227 = vadd.f32 %v223, %v224
  %v228 = vadd.f32 %v227, %v225
  %v229 = vadd.f32 %v228, %v226
  %v230 = vrot.slane %v229, 4
  %v231 = vadd.f32 %v229, %v230
  %v232 = vrot.slane %v231, 2
  %v233 = vadd.f32 %v231, %v232
  %v234 = vrot.slane %v233, 1
  %v235 = vadd.f32 %v233, %v234
  %v236 = vld [vmem:[%s1] sm:$0x1]
  %v237 = vadd.f32 %v235, %v236
  %238 = vst [vmem:[%s9] sm:$0x1] %v237
  %v239 = vmul.f32 %v195, %v195
  %v240 = vmul.f32 %v196, %v196
  %v241 = vmul.f32 %v197, %v197
  %v242 = vmul.f32 %v198, %v198
  %v243 = vsub.f32 1.0, %v239
  %v244 = vsub.f32 1.0, %v240
  %v245 = vsub.f32 1.0, %v241
  %v246 = vsub.f32 1.0, %v242
  %v247 = vmul.f32 %v206, %v243
  %v248 = vmul.f32 %v211, %v244
  %v249 = vmul.f32 %v216, %v245
  %v250 = vmul.f32 %v221, %v246
  %v251 = vld [vmem:[%s6] sm:$0xff]
  %v252 = vld [vmem:[%s6 + $0x8] sm:$0xff]
  %v253 = vld [vmem:[%s6 + $0x10] sm:$0xff]
  %v254 = vld [vmem:[%s6 + $0x18] sm:$0xff]
  %v256 = vsel %vm153, %v251, 0
  %v259 = vsel %vm153, %v252, 0
  %v262 = vsel %vm153, %v253, 0
  %v265 = vsel %vm153, %v254, 0
  %267 = vmatpush.msra.mxu0 0.0
  %268 = vmatpush.msra.mxu0 0.0
  %269 = vmatpush.msra.mxu0 0.0
  %270 = vmatpush.msra.mxu0 0.0
  %271 = vmatpush.msra.mxu0 0.0
  %272 = vmatpush.msra.mxu0 0.0
  %273 = vmatpush.msra.mxu0 0.0
  %274 = vmatpush.msra.mxu0 0.0
  %275 = vmatpush.msra.mxu0 0.0
  %276 = vmatpush.msra.mxu0 0.0
  %277 = vmatpush.msra.mxu0 0.0
  %278 = vmatpush.msra.mxu0 0.0
  %279 = vmatpush.msra.mxu0 %v250
  %280 = vmatpush.msra.mxu0 %v249
  %281 = vmatpush.msra.mxu0 %v248
  %282 = vmatpush.msra.mxu0 %v247
  %283 = vmatmul.f32.gmra.mxu0 %v256
  %v284 = vpop.f32.mrf.mxu0
  %v285 = vadd.f32 0.0, %v284
  %286 = vmatmul.f32.gmra.mxu0 %v259
  %v287 = vpop.f32.mrf.mxu0
  %v288 = vadd.f32 0.0, %v287
  %289 = vmatmul.f32.gmra.mxu0 %v262
  %v290 = vpop.f32.mrf.mxu0
  %v291 = vadd.f32 0.0, %v290
  %292 = vmatmul.f32.gmra.mxu0 %v265
  %v293 = vpop.f32.mrf.mxu0
  %v294 = vadd.f32 0.0, %v293
  %295 = vdwg.mxu0
  %v296 = vmul.f32 %v121, %v121
  %v297 = vmul.f32 %v122, %v122
  %v298 = vmul.f32 %v123, %v123
  %v299 = vmul.f32 %v124, %v124
  %v300 = vsub.f32 1.0, %v296
  %v301 = vsub.f32 1.0, %v297
  %v302 = vsub.f32 1.0, %v298
  %v303 = vsub.f32 1.0, %v299
  %v304 = vmul.f32 %v285, %v300
  %v305 = vmul.f32 %v288, %v301
  %v306 = vmul.f32 %v291, %v302
  %v307 = vmul.f32 %v294, %v303
  %v308 = vld [vmem:[%s3] sm:$0xff]
  %v309 = vld [vmem:[%s3 + $0x8] sm:$0xff]
  %v310 = vld [vmem:[%s3 + $0x10] sm:$0xff]
  %v311 = vld [vmem:[%s3 + $0x18] sm:$0xff]
  %v312 = vld [vmem:[%s3 + $0x20] sm:$0xff]
  %v313 = vld [vmem:[%s3 + $0x28] sm:$0xff]
  %v314 = vld [vmem:[%s3 + $0x30] sm:$0xff]
  %v315 = vld [vmem:[%s3 + $0x38] sm:$0xff]
  %v316 = vld [vmem:[%s3 + $0x40] sm:$0xff]
  %v318 = vsel %vm153, %v308, 0
  %v321 = vsel %vm153, %v309, 0
  %v324 = vsel %vm153, %v310, 0
  %v327 = vsel %vm153, %v311, 0
  %v330 = vsel %vm153, %v312, 0
  %v333 = vsel %vm153, %v313, 0
  %v336 = vsel %vm153, %v314, 0
  %v339 = vsel %vm153, %v315, 0
  %v342 = vsel %vm153, %v316, 0
  %344 = vmatpush.msra.mxu0 0.0
  %345 = vmatpush.msra.mxu0 0.0
  %346 = vmatpush.msra.mxu0 0.0
  %347 = vmatpush.msra.mxu0 0.0
  %348 = vmatpush.msra.mxu0 0.0
  %349 = vmatpush.msra.mxu0 0.0
  %350 = vmatpush.msra.mxu0 0.0
  %351 = vmatpush.msra.mxu0 0.0
  %352 = vmatpush.msra.mxu0 0.0
  %353 = vmatpush.msra.mxu0 0.0
  %354 = vmatpush.msra.mxu0 0.0
  %355 = vmatpush.msra.mxu0 0.0
  %356 = vmatpush.msra.mxu0 %v307
  %357 = vmatpush.msra.mxu0 %v306
  %358 = vmatpush.msra.mxu0 %v305
  %359 = vmatpush.msra.mxu0 %v304
  %360 = vmatmul.f32.gmra.mxu0 %v318
  %v361 = vpop.f32.mrf.mxu0
  %v362 = vadd.f32 0.0, %v361
  %363 = vmatmul.f32.gmra.mxu0 %v321
  %v364 = vpop.f32.mrf.mxu0
  %v365 = vadd.f32 0.0, %v364
  %366 = vmatmul.f32.gmra.mxu0 %v324
  %v367 = vpop.f32.mrf.mxu0
  %v368 = vadd.f32 0.0, %v367
  %369 = vmatmul.f32.gmra.mxu0 %v327
  %v370 = vpop.f32.mrf.mxu0
  %v371 = vadd.f32 0.0, %v370
  %372 = vmatmul.f32.gmra.mxu0 %v330
  %v373 = vpop.f32.mrf.mxu0
  %v374 = vadd.f32 0.0, %v373
  %375 = vmatmul.f32.gmra.mxu0 %v333
  %v376 = vpop.f32.mrf.mxu0
  %v377 = vadd.f32 0.0, %v376
  %378 = vmatmul.f32.gmra.mxu0 %v336
  %v379 = vpop.f32.mrf.mxu0
  %v380 = vadd.f32 0.0, %v379
  %381 = vmatmul.f32.gmra.mxu0 %v339
  %v382 = vpop.f32.mrf.mxu0
  %v383 = vadd.f32 0.0, %v382
  %384 = vmatmul.f32.gmra.mxu0 %v342
  %v385 = vpop.f32.mrf.mxu0
  %v386 = vadd.f32 0.0, %v385
  %387 = vdwg.mxu0
  %v388 = vmul.f32 %v365, %v35
  %v389 = vadd.f32 %v362, %v388
  %v390 = vmul.f32 %v365, %v34
  %v391 = vrot.slane %v390, 4
  %v392 = vadd.f32 %v390, %v391
  %v393 = vrot.slane %v392, 2
  %v394 = vadd.f32 %v392, %v393
  %v395 = vrot.slane %v394, 1
  %v396 = vadd.f32 %v394, %v395
  %v397 = vmul.f32 %v368, %v37
  %v398 = vadd.f32 %v389, %v397
  %v399 = vmul.f32 %v368, %v34
  %v400 = vrot.slane %v399, 4
  %v401 = vadd.f32 %v399, %v400
  %v402 = vrot.slane %v401, 2
  %v403 = vadd.f32 %v401, %v402
  %v404 = vrot.slane %v403, 1
  %v405 = vadd.f32 %v403, %v404
  %v406 = vmul.f32 %v371, %v39
  %v407 = vadd.f32 %v398, %v406
  %v408 = vmul.f32 %v371, %v34
  %v409 = vrot.slane %v408, 4
  %v410 = vadd.f32 %v408, %v409
  %v411 = vrot.slane %v410, 2
  %v412 = vadd.f32 %v410, %v411
  %v413 = vrot.slane %v412, 1
  %v414 = vadd.f32 %v412, %v413
  %v415 = vmul.f32 %v374, %v41
  %v416 = vadd.f32 %v407, %v415
  %v417 = vmul.f32 %v374, %v34
  %v418 = vrot.slane %v417, 4
  %v419 = vadd.f32 %v417, %v418
  %v420 = vrot.slane %v419, 2
  %v421 = vadd.f32 %v419, %v420
  %v422 = vrot.slane %v421, 1
  %v423 = vadd.f32 %v421, %v422
  %v424 = vmul.f32 %v377, %v43
  %v425 = vadd.f32 %v416, %v424
  %v426 = vmul.f32 %v377, %v34
  %v427 = vrot.slane %v426, 4
  %v428 = vadd.f32 %v426, %v427
  %v429 = vrot.slane %v428, 2
  %v430 = vadd.f32 %v428, %v429
  %v431 = vrot.slane %v430, 1
  %v432 = vadd.f32 %v430, %v431
  %v433 = vmul.f32 %v380, %v45
  %v434 = vadd.f32 %v425, %v433
  %v435 = vmul.f32 %v380, %v34
  %v436 = vrot.slane %v435, 4
  %v437 = vadd.f32 %v435, %v436
  %v438 = vrot.slane %v437, 2
  %v439 = vadd.f32 %v437, %v438
  %v440 = vrot.slane %v439, 1
  %v441 = vadd.f32 %v439, %v440
  %v442 = vmul.f32 %v383, %v47
  %v443 = vadd.f32 %v434, %v442
  %v444 = vmul.f32 %v383, %v34
  %v445 = vrot.slane %v444, 4
  %v446 = vadd.f32 %v444, %v445
  %v447 = vrot.slane %v446, 2
  %v448 = vadd.f32 %v446, %v447
  %v449 = vrot.slane %v448, 1
  %v450 = vadd.f32 %v448, %v449
  %v451 = vmul.f32 %v386, %v49
  %v452 = vadd.f32 %v443, %v451
  %v453 = vmul.f32 %v386, %v34
  %v454 = vrot.slane %v453, 4
  %v455 = vadd.f32 %v453, %v454
  %v456 = vrot.slane %v455, 2
  %v457 = vadd.f32 %v455, %v456
  %v458 = vrot.slane %v457, 1
  %v459 = vadd.f32 %v457, %v458
  %vm460 = vcmask 1040384
  %v461 = vsel %vm460, %v396, %v405
  %vm462 = vcmask 1041408
  %v463 = vsel %vm462, %v461, %v414
  %vm464 = vcmask 1042432
  %v465 = vsel %vm464, %v463, %v423
  %vm466 = vcmask 1043456
  %v467 = vsel %vm466, %v465, %v432
  %vm468 = vcmask 1044480
  %v469 = vsel %vm468, %v467, %v441
  %vm470 = vcmask 1045504
  %v471 = vsel %vm470, %v469, %v450
  %vm472 = vcmask 1046528
  %v473 = vsel %vm472, %v471, %v459
  %v474 = vadd.f32 %v452, %v473
  %475 = vst [vmem:[%s10] sm:$0xff] %v474
  // Predicated region
  $region38: #{jvp__.1} parent=0 // pred_check
    _
  $region39: #{jvp__.1} parent=0 // pred_check_branch
    %477 = sbr.rel (0) target = $region41
  $region40: #{jvp__.1} parent=0 // pred_region
    _
  $region41: #{jvp__.1} parent=0 // pred_fallthru
    _
  // Predicated region
  $region42: #{jvp__.1} parent=0 // pred_check
    _
  $region43: #{jvp__.1} parent=0 // pred_check_branch
    %479 = sbr.rel (0) target = $region45
  $region44: #{jvp__.1} parent=0 // pred_region
    _
  $region45: #{jvp__.1} parent=0 // pred_fallthru
    _
  // Predicated region
  $region46: #{jvp__.1} parent=0 // pred_check
    _
  $region47: #{jvp__.1} parent=0 // pred_check_branch
    %481 = sbr.rel (0) target = $region49
  $region48: #{jvp__.1} parent=0 // pred_region
    _
  $region49: #{jvp__.1} parent=0 // pred_fallthru
    _
  // Predicated region
  $region50: #{jvp__.1} parent=0 // pred_check
    _
  $region51: #{jvp__.1} parent=0 // pred_check_branch
    %483 = sbr.rel (0) target = $region53
  $region52: #{jvp__.1} parent=0 // pred_region
    _
  $region53: #{jvp__.1} parent=0 // pred_fallthru
    _

</llo_original>
